<compile_context>
chip_gen: v7x
topology: tpu7x:2x2x1
jax: 0.10.0
libtpu: 0.0.40
codegen_flags: <defaults>
</compile_context>

<pallas_src>
import functools

import numpy as np
import jax
import jax.numpy as jnp
from jax.experimental import pallas as pl
from jax.experimental.pallas import tpu as pltpu


# ---------------------------------------------------------------------------
# Kernels
# ---------------------------------------------------------------------------
def _dma_copy_kernel(x_hbm_ref, o_hbm_ref, sem):
    # Single whole-array HBM -> HBM DMA: no VMEM round-trip, no grid overhead.
    cp = pltpu.make_async_copy(x_hbm_ref, o_hbm_ref, sem)
    cp.start()
    cp.wait()


def _vmem_copy_kernel(x_ref, o_ref):
    # Identity copy of one lane-dense tile of the flattened tensor.
    o_ref[...] = x_ref[...]


# ---------------------------------------------------------------------------
# Hardware queries / sizing
# ---------------------------------------------------------------------------
def _vmem_capacity_bytes():
    try:
        info = pltpu.get_tpu_info()
        return int(getattr(info, "vmem_capacity_bytes", 64 << 20))
    except Exception:
        return 64 << 20  # conservative default: v7x per-TC VMEM


def _sublane_align(itemsize):
    # Sublane alignment by element width: f32 -> 8, bf16 -> 16, int8/fp8 -> 32.
    return {4: 8, 2: 16, 1: 32}.get(itemsize, 8)


def _target_block_bytes(vmem):
    # ~VMEM/8 per block: in + out, double-buffered => ~4x resident (~VMEM/2).
    # v7x (64 MiB) -> 8 MiB blocks; v5e/v6e (128 MiB) -> 16 MiB blocks.
    return int(max(1 << 20, vmem // 8))


# ---------------------------------------------------------------------------
# Preferred path: single HBM->HBM DMA
# ---------------------------------------------------------------------------
def _dma_copy_call(n, k, dtype):
    itemsize = jnp.dtype(dtype).itemsize
    return pl.pallas_call(
        _dma_copy_kernel,
        out_shape=jax.ShapeDtypeStruct((n, k), dtype),
        in_specs=[pl.BlockSpec(memory_space=pl.ANY)],
        out_specs=pl.BlockSpec(memory_space=pl.ANY),
        scratch_shapes=[pltpu.SemaphoreType.DMA],
        cost_estimate=pl.CostEstimate(
            flops=0, transcendentals=0, bytes_accessed=2 * n * k * itemsize),
    )


@functools.lru_cache(maxsize=None)
def _dma_path_ok(n, k, dtype_name):
    # Probe once per (shape, dtype), eagerly on concrete zeros, so a Mosaic
    # rejection of HBM->HBM DMA degrades to the tiled path instead of failing
    # inside a jit compile.
    try:
        dtype = jnp.dtype(dtype_name)
        out = _dma_copy_call(n, k, dtype)(jnp.zeros((n, k), dtype))
        jax.block_until_ready(out)
        return True
    except Exception:
        return False


# ---------------------------------------------------------------------------
# Fallback path: lane-dense tiled VMEM copy
# ---------------------------------------------------------------------------
def _tiled_copy(x_flat):
    n, k = x_flat.shape
    total = n * k
    dtype = x_flat.dtype
    itemsize = jnp.dtype(dtype).itemsize
    align = _sublane_align(itemsize)
    vmem = _vmem_capacity_bytes()
    target = _target_block_bytes(vmem)

    # Re-view the flat buffer as a lane-dense slab: widest lane width (multiple
    # of 128) that divides the element count.
    lanes = None
    for cand in (1024, 512, 256, 128):
        if total % cand == 0:
            lanes = cand
            break
    if lanes is None:
        # Irregular size: never emit sub-128-lane (masked-store) blocks.  The
        # flatten is semantically a view, so hand the copy to XLA instead.
        return jnp.copy(x_flat)

    rows = total // lanes
    x2d = x_flat.reshape(rows, lanes)

    # Rows per block: ~target bytes, sublane-aligned.
    row_block = max(align, (target // (lanes * itemsize) // align) * align)
    if row_block >= rows:
        if rows >= 2 * align:
            # Split into >=2 blocks so "parallel" can shard across v7x's two
            # TensorCores and double-buffering stays active.
            row_block = ((pl.cdiv(rows, 2) + align - 1) // align) * align
        else:
            row_block = rows  # full-extent block: always layout-legal

    grid = (pl.cdiv(rows, row_block),)
    block_bytes = row_block * lanes * itemsize
    vmem_limit = int(min(vmem, max(32 << 20, 4 * block_bytes + (8 << 20))))

    out2d = pl.pallas_call(
        _vmem_copy_kernel,
        out_shape=jax.ShapeDtypeStruct((rows, lanes), dtype),
        grid=grid,
        in_specs=[pl.BlockSpec((row_block, lanes), lambda i: (i, 0))],
        out_specs=pl.BlockSpec((row_block, lanes), lambda i: (i, 0)),
        compiler_params=pltpu.CompilerParams(
            dimension_semantics=("parallel",),
            vmem_limit_bytes=vmem_limit,
        ),
        cost_estimate=pl.CostEstimate(
            flops=0, transcendentals=0, bytes_accessed=2 * total * itemsize),
    )(x2d)
    return out2d.reshape(n, k)


# ---------------------------------------------------------------------------
# Public wrapper (== torch Flatten.forward)
# ---------------------------------------------------------------------------
def flatten_pallas(x, *, materialize=True):
    """Equivalent of torch Flatten: x.view(x.shape[0], prod(x.shape[1:])).

    Invoke under jax.jit so the surrounding reshapes stay metadata-only.
    """
    n = x.shape[0]
    # TODO(synk): torch's x.view(N, np.prod(shape[1:])) is ill-defined for 1-D
    # inputs (np.prod(()) == 1.0); we use K=1 for that degenerate case.
    k = int(np.prod(x.shape[1:])) if x.ndim > 1 else 1

    x_flat = x.reshape(n, k)  # metadata-only reshape (== torch .view)
    if not materialize or x_flat.size == 0:
        return x_flat

    if _dma_path_ok(n, k, jnp.dtype(x.dtype).name):
        return _dma_copy_call(n, k, x.dtype)(x_flat)
    return _tiled_copy(x_flat)


if __name__ == "__main__":
    key = jax.random.PRNGKey(0)
    # Small NCHW input consistent with a CNN feature map: (N, C, H, W)
    x = jax.random.normal(key, (2, 4, 16, 16), dtype=jnp.float32)

    # Reference: pure-JAX flatten (same semantics as torch .view(N, -1))
    ref = x.reshape(x.shape[0], -1)

    flatten_jit = jax.jit(flatten_pallas, static_argnames=("materialize",))

    # Materializing kernel path (HBM->HBM DMA, or tiled VMEM copy fallback).
    out = jax.block_until_ready(flatten_jit(x, materialize=True))
    assert out.shape == (2, 4 * 16 * 16), out.shape
    assert out.dtype == x.dtype
    np.testing.assert_array_equal(np.asarray(out), np.asarray(ref))

    # Zero-copy fast path (metadata reshape only) must match as well.
    out_fast = jax.block_until_ready(flatten_jit(x, materialize=False))
    np.testing.assert_array_equal(np.asarray(out_fast), np.asarray(ref))

    print("KERNEL_OK")
</pallas_src>

<mosaic_0001>
module attributes {stable_mosaic.version = 11 : i64} {
  func.func @_dma_copy_kernel(%arg0: memref<2x1024xf32, #tpu.memory_space<any>>, %arg1: memref<2x1024xf32, #tpu.memory_space<any>>, %arg2: memref<!tpu.dma_semaphore, #tpu.memory_space<semaphore_mem>>) attributes {dimension_semantics = [], scalar_prefetch = 0 : i64, scratch_operands = 1 : i64, tpu.core_type = #tpu.core_type<tc>} {
    tpu.enqueue_dma source(%arg0 : memref<2x1024xf32, #tpu.memory_space<any>>) target(%arg1 : memref<2x1024xf32, #tpu.memory_space<any>>) target_semaphore(%arg2 : memref<!tpu.dma_semaphore, #tpu.memory_space<semaphore_mem>>)
    tpu.wait_dma2 semaphore(%arg2 : memref<!tpu.dma_semaphore, #tpu.memory_space<semaphore_mem>>) src(%arg0 : memref<2x1024xf32, #tpu.memory_space<any>>) dst(%arg1 : memref<2x1024xf32, #tpu.memory_space<any>>)
    return
  }
}

</mosaic_0001>

<llo_original>
// kernel: flatten_pallas.1
$region0: #{flatten_pallas.1}
  #allocation0 [shape = 'u32[]', space=smem, size = 0x4, offset = 0x4, fixed_abs, tag = 'smem constant byte address 0x4 - core index']
  #allocation1 [shape = 'u32[144,128]{1,0:T(1,128)}', space=vmem, size = 0x12000, scoped, tag = 'internal scratch']
  #allocation2 [shape = 's32[1]{0}', space=sflag, size = 0x4, scoped, tag = 'scratch operand']
  #allocation3 [shape = 's32[]', space=sflag, size = 0x4, offset = 0, fixed_abs, tag = 'sflag constant byte address 0x0 - dummy sync flag']
  #allocation4 [shape = 's32[]', space=sflag, size = 0x4, offset = 0, fixed_abs, tag = 'sflag constant byte address 0x0 - dummy sync flag']
  #allocation5 [shape = 'u32[]', space=smem, size = 0x4, offset = 0x44, fixed_abs, tag = 'smem constant byte address 0x44 - assertion arg 0']
  #allocation6 [shape = 'u32[]', space=smem, size = 0x4, offset = 0x48, fixed_abs, tag = 'smem constant byte address 0x48 - assertion arg 1']
  %s0 = inlined_call_operand.vmem [shape: f32[2,1024], index: 0, kind: input, shape index: {}]
  %s1 = inlined_call_operand.hbm [shape: f32[2,1024], index: 1, kind: output, shape index: {}]
  %s2 = sld [smem:[#allocation0]]
  $region6: #{flatten_pallas.1} parent=0
    _
  %s4 = ssub.s32 1, %s2
  %s5 = scalar_select 0, %s4, %s2
  // Predicated region
  $region2: #{flatten_pallas.1} parent=0 // pred_check
    _
  $region3: #{flatten_pallas.1} parent=0 // pred_check_branch
    %7 = sbr.rel target = $region5
  $region4: #{flatten_pallas.1} parent=0 // pred_region
    %8 = sst [smem:[#allocation5]] [#allocation4]
    %9 = sst [smem:[#allocation6]] [#allocation3]
  $region5: #{flatten_pallas.1} parent=0 // pred_fallthru
    _
  %11 = shalt.err (0)
  %s13 = sshll.u32 %s0, 4
  %s14 = int_to_ptr.vmem [resolvable:$true] %s13
  %16 = dma.vmem_to_hbm [thread:$0]  %s14, 256, %s1, [#allocation2]
  %s17 = smul.u32 2, 1
  %s18 = smul.u32 %s17, 8
  %s19 = sshll.u32 %s18, 4
  %20 = dma.done [#allocation2], %s19
  %21 = vsyncmov [#allocation2]
  %s22 = vpop.sfrf %21
  %p23 = scmp.eq.s32.totalorder %s22, 0
  %p24 = pneg %p23
  %26 = shalt.err (%p24)

</llo_original>
